<compile_context>
chip_gen: v7x
topology: tpu7x:2x2x1
jax: 0.10.0
libtpu: 0.0.40
codegen_flags: <defaults>
</compile_context>

<pallas_src>
import jax
import jax.numpy as jnp
from jax.experimental import pallas as pl
from jax.experimental.pallas import tpu as pltpu


def _attention_kernel(x_ref, w_ref, b_ref, o_ref):
    """One batch tile.

    x_ref: (Bt, S, Dp)  inputs
    w_ref: (1, Dp)      scoring weight (column vector, laid out lane-dense)
    b_ref: (1, S)       per-step bias
    o_ref: (Bt, Dp)     pooled output
    """
    x = x_ref[...]                                   # (Bt, S, Dp) f32
    w = w_ref[...]                                   # (1, Dp)
    b = b_ref[...]                                   # (1, S)

    # eij[bt, s] = sum_d x[bt, s, d] * w[d]   (lane reduce -> XLU)
    eij = jnp.sum(x * w[None, :, :], axis=-1)        # (Bt, S)
    eij = jnp.tanh(eij + b)                          # bias + tanh (EUP)
    a = jnp.exp(eij)                                 # (Bt, S)  (EUP)

    # TODO(synk): optional `mask` multiply (mask=None inference path only).
    a = a / jnp.sum(a, axis=-1, keepdims=True) + 1e-10

    # weighted pooling over the step axis (sublane reduce -> XLU)
    o_ref[...] = jnp.sum(x * a[:, :, None], axis=1)  # (Bt, Dp)


def _pick_bt(batch, steps, dp, tile_budget_bytes=4 << 20):
    """Batch-tile size: multiple of 8, x-tile under ~4 MiB, capped at 512."""
    per_row = max(steps * dp * 4, 1)                 # f32 bytes per batch row
    bt = (tile_budget_bytes // per_row) // 8 * 8
    bt = max(8, min(bt, 512))
    b_pad8 = ((batch + 7) // 8) * 8
    return min(bt, b_pad8)


def attention_forward(x, weight, bias):
    """x: (B, S, D); weight: (D, 1) or (D,); bias: (S,). Returns (B, D) f32."""
    B, S, D = x.shape
    x = x.astype(jnp.float32)
    w = jnp.reshape(weight, (1, D)).astype(jnp.float32)
    b = jnp.reshape(bias, (1, S)).astype(jnp.float32)

    # Lane-dense feature axis: pad D up to a multiple of 128.
    Dp = ((D + 127) // 128) * 128
    if Dp != D:
        x = jnp.pad(x, ((0, 0), (0, 0), (0, Dp - D)))
        w = jnp.pad(w, ((0, 0), (0, Dp - D)))

    # Batch tiling: pad B up to a multiple of the chosen tile size.
    Bt = _pick_bt(B, S, Dp)
    Bp = ((B + Bt - 1) // Bt) * Bt
    if Bp != B:
        x = jnp.pad(x, ((0, Bp - B), (0, 0), (0, 0)))

    grid = (Bp // Bt,)

    out = pl.pallas_call(
        _attention_kernel,
        out_shape=jax.ShapeDtypeStruct((Bp, Dp), jnp.float32),
        grid_spec=pltpu.PrefetchScalarGridSpec(
            num_scalar_prefetch=0,
            grid=grid,
            in_specs=[
                pl.BlockSpec((Bt, S, Dp), lambda i: (i, 0, 0)),  # x batch tile
                pl.BlockSpec((1, Dp),     lambda i: (0, 0)),     # weight (resident)
                pl.BlockSpec((1, S),      lambda i: (0, 0)),     # bias   (resident)
            ],
            out_specs=pl.BlockSpec((Bt, Dp), lambda i: (i, 0)),
        ),
        compiler_params=pltpu.CompilerParams(
            dimension_semantics=("parallel",)),
    )(x, w, b)
    return out[:B, :D]


def _attention_ref(x, weight, bias):
    """Pure-JAX reference mirroring the PyTorch forward (mask=None)."""
    eij = jnp.einsum('bsd,do->bs', x, weight) + bias[None, :]
    eij = jnp.tanh(eij)
    a = jnp.exp(eij)
    a = a / jnp.sum(a, axis=1, keepdims=True) + 1e-10
    return jnp.sum(x * a[:, :, None], axis=1)


if __name__ == "__main__":
    # Small shapes consistent with the module's forward:
    #   x: (batch, step_dim, feature_dim); weight: (feature_dim, 1); b: (step_dim,)
    B, S, D = 2, 8, 32

    key = jax.random.PRNGKey(0)
    kx, kw, kb = jax.random.split(key, 3)

    x = jax.random.normal(kx, (B, S, D), jnp.float32)
    weight = jax.random.normal(kw, (D, 1), jnp.float32) * 0.1   # xavier-ish scale
    bias = jax.random.normal(kb, (S,), jnp.float32) * 0.1

    out = attention_forward(x, weight, bias)
    jax.block_until_ready(out)

    ref = _attention_ref(x, weight, bias)
    assert out.shape == (B, D) and out.dtype == jnp.float32
    assert jnp.allclose(out, ref, atol=1e-4, rtol=1e-4), "mismatch vs reference"
    print("KERNEL_OK")
</pallas_src>

<mosaic_0001>
module attributes {stable_mosaic.version = 11 : i64} {
  func.func @_attention_kernel(%arg0: i32, %arg1: memref<8x8x128xf32, #tpu.memory_space<vmem>>, %arg2: memref<1x128xf32, #tpu.memory_space<vmem>>, %arg3: memref<1x8xf32, #tpu.memory_space<vmem>>, %arg4: memref<8x128xf32, #tpu.memory_space<vmem>>) attributes {dimension_semantics = [#tpu.dimension_semantics<parallel>], iteration_bounds = array<i64: 1>, scalar_prefetch = 0 : i64, scratch_operands = 0 : i64, tpu.core_type = #tpu.core_type<tc>, window_params = [{transform_indices = @transform_0, window_bounds = array<i64: 8, 8, 128>}, {pipeline_mode = #tpu.pipeline_mode<synchronous>, transform_indices = @transform_1, window_bounds = array<i64: 1, 128>}, {pipeline_mode = #tpu.pipeline_mode<synchronous>, transform_indices = @transform_2, window_bounds = array<i64: 1, 8>}, {transform_indices = @transform_3, window_bounds = array<i64: 8, 128>}]} {
    %c0 = arith.constant 0 : index
    %c0_0 = arith.constant 0 : index
    %c0_1 = arith.constant 0 : index
    %0 = vector.load %arg1[%c0, %c0_0, %c0_1] : memref<8x8x128xf32, #tpu.memory_space<vmem>>, vector<8x8x128xf32>
    %c0_2 = arith.constant 0 : index
    %c0_3 = arith.constant 0 : index
    %1 = vector.load %arg2[%c0_2, %c0_3] : memref<1x128xf32, #tpu.memory_space<vmem>>, vector<1x128xf32>
    %c0_4 = arith.constant 0 : index
    %c0_5 = arith.constant 0 : index
    %2 = vector.load %arg3[%c0_4, %c0_5] : memref<1x8xf32, #tpu.memory_space<vmem>>, vector<1x8xf32>
    %3 = vector.shape_cast %1 : vector<1x128xf32> to vector<1x1x128xf32>
    %4 = vector.broadcast %3 : vector<1x1x128xf32> to vector<8x8x128xf32>
    %5 = arith.mulf %0, %4 : vector<8x8x128xf32>
    %cst = arith.constant dense<0.000000e+00> : vector<8x8xf32>
    %6 = vector.multi_reduction <add>, %5, %cst [2] : vector<8x8x128xf32> to vector<8x8xf32>
    %7 = vector.broadcast %2 : vector<1x8xf32> to vector<8x8xf32>
    %8 = arith.addf %6, %7 : vector<8x8xf32>
    %9 = math.tanh %8 : vector<8x8xf32>
    %10 = math.exp %9 : vector<8x8xf32>
    %cst_6 = arith.constant dense<0.000000e+00> : vector<8xf32>
    %11 = vector.multi_reduction <add>, %10, %cst_6 [1] : vector<8x8xf32> to vector<8xf32>
    %12 = vector.shape_cast %11 : vector<8xf32> to vector<8x1xf32>
    %13 = vector.broadcast %12 : vector<8x1xf32> to vector<8x8xf32>
    %14 = arith.divf %10, %13 : vector<8x8xf32>
    %cst_7 = arith.constant 1.000000e-10 : f32
    %15 = vector.broadcast %cst_7 : f32 to vector<8x8xf32>
    %16 = arith.addf %14, %15 : vector<8x8xf32>
    %17 = vector.shape_cast %16 : vector<8x8xf32> to vector<8x8x1xf32>
    %18 = vector.broadcast %17 : vector<8x8x1xf32> to vector<8x8x128xf32>
    %19 = arith.mulf %0, %18 : vector<8x8x128xf32>
    %cst_8 = arith.constant dense<0.000000e+00> : vector<8x128xf32>
    %20 = vector.multi_reduction <add>, %19, %cst_8 [1] : vector<8x8x128xf32> to vector<8x128xf32>
    %c0_9 = arith.constant 0 : index
    %c0_10 = arith.constant 0 : index
    %21 = vector.load %arg4[%c0_9, %c0_10] : memref<8x128xf32, #tpu.memory_space<vmem>>, vector<8x128xf32>
    tpu.vector_store %arg4[%c0_9, %c0_10], %20 {strides = array<i32>} : memref<8x128xf32, #tpu.memory_space<vmem>>, vector<8x128xf32>,
    return
  }
  func.func @transform_0(%arg0: i32) -> (i32, i32, i32) {
    %c0_i32 = arith.constant 0 : i32
    %c0_i32_0 = arith.constant 0 : i32
    %c0_i32_1 = arith.constant 0 : i32
    return %arg0, %c0_i32, %c0_i32_0 : i32, i32, i32
  }
  func.func @transform_1(%arg0: i32) -> (i32, i32) {
    %c0_i32 = arith.constant 0 : i32
    %c0_i32_0 = arith.constant 0 : i32
    %c0_i32_1 = arith.constant 0 : i32
    return %c0_i32, %c0_i32_0 : i32, i32
  }
  func.func @transform_2(%arg0: i32) -> (i32, i32) {
    %c0_i32 = arith.constant 0 : i32
    %c0_i32_0 = arith.constant 0 : i32
    %c0_i32_1 = arith.constant 0 : i32
    return %c0_i32, %c0_i32_0 : i32, i32
  }
  func.func @transform_3(%arg0: i32) -> (i32, i32) {
    %c0_i32 = arith.constant 0 : i32
    %c0_i32_0 = arith.constant 0 : i32
    return %arg0, %c0_i32 : i32, i32
  }
}

</mosaic_0001>

<llo_original>
// kernel: tpu_custom_call.1
$region0: #{tpu_custom_call.1}
  #allocation0 [shape = 'u32[]', space=smem, size = 0x4, offset = 0x4, fixed_abs, tag = 'smem constant byte address 0x4 - core index']
  #allocation1 [shape = 'u32[144,128]{1,0:T(1,128)}', space=vmem, size = 0x12000, scoped, tag = 'internal scratch']
  %s0 = inlined_call_operand.hbm [shape: f32[8,8,128], index: 0, kind: input, shape index: {}]
  %s1 = inlined_call_operand.vmem [shape: f32[1,128], index: 1, kind: input, shape index: {}]
  %s2 = inlined_call_operand.vmem [shape: f32[1,8], index: 2, kind: input, shape index: {}]
  %s3 = inlined_call_operand.hbm [shape: f32[8,128], index: 3, kind: output, shape index: {}]
  %s4 = sld [smem:[#allocation0]]
  $region26: #{tpu_custom_call.1} parent=0
    _
  %s6 = ssub.s32 1, %s4
  %s7 = scalar_select 0, %s6, %s4
  $region1: #{tpu_custom_call.1} parent=0
    #allocation2 [shape = 'u8[32768]{0}', space=vmem, size = 0x8000, scoped, tag = 'input window, operand 0, single buffered']
    #allocation3 [shape = 's32[1]{0}', space=sflag, size = 0x4, scoped, tag = 'scoped memory for tpu_custom_call.1']
    #allocation4 [shape = 's32[1]{0}', space=sflag, size = 0x4, scoped, tag = 'scoped memory for tpu_custom_call.1']
    #allocation5 [shape = 'u8[4096]{0}', space=vmem, size = 0x1000, scoped, tag = 'output window, operand 0, single buffered']
    %8 = vsyncpa [#allocation3], 0
    %9 = vsyncpa [#allocation4], 0
    // Predicated region
    $region2: #{tpu_custom_call.1} parent=1 // pred_check
      _
    $region3: #{tpu_custom_call.1} parent=1 // pred_check_branch
      %11 = sbr.rel (0) target = $region5
    $region4: #{tpu_custom_call.1} parent=1 // pred_region
      %s13 = ssub.s32 1024, 1024
      %14 = vsyncadd [#allocation3], %s13
      %s15 = sshll.u32 [#allocation2], 4
      %s16 = int_to_ptr.vmem [resolvable:$true] %s15
      %21 = dma.hbm_to_vmem [thread:$0]  %s0, 1024, %s16, [#allocation3], 128, 128, 8
    $region5: #{tpu_custom_call.1} parent=1 // pred_fallthru
      _
    // Predicated region
    $region6: #{tpu_custom_call.1} parent=1 // pred_check
      _
    $region7: #{tpu_custom_call.1} parent=1 // pred_check_branch
      %23 = sbr.rel (0) target = $region9
    $region8: #{tpu_custom_call.1} parent=1 // pred_region
      _
    $region9: #{tpu_custom_call.1} parent=1 // pred_fallthru
      _
    // Predicated region
    $region10: #{tpu_custom_call.1} parent=1 // pred_check
      _
    $region11: #{tpu_custom_call.1} parent=1 // pred_check_branch
      %25 = sbr.rel (0) target = $region13
    $region12: #{tpu_custom_call.1} parent=1 // pred_region
      _
    $region13: #{tpu_custom_call.1} parent=1 // pred_fallthru
      _
    // Predicated region
    $region14: #{tpu_custom_call.1} parent=1 // pred_check
      _
    $region15: #{tpu_custom_call.1} parent=1 // pred_check_branch
      %27 = sbr.rel (0) target = $region17
    $region16: #{tpu_custom_call.1} parent=1 // pred_region
      %28 = dma.done [#allocation3], 1024
    $region17: #{tpu_custom_call.1} parent=1 // pred_fallthru
      _
    %v29 = vld [vmem:[#allocation2] sm:$0xff]
    %v30 = vld [vmem:[#allocation2 + $0x8] sm:$0xff]
    %v31 = vld [vmem:[#allocation2 + $0x10] sm:$0xff]
    %v32 = vld [vmem:[#allocation2 + $0x18] sm:$0xff]
    %v33 = vld [vmem:[#allocation2 + $0x20] sm:$0xff]
    %v34 = vld [vmem:[#allocation2 + $0x28] sm:$0xff]
    %v35 = vld [vmem:[#allocation2 + $0x30] sm:$0xff]
    %v36 = vld [vmem:[#allocation2 + $0x38] sm:$0xff]
    %v37 = vld [vmem:[%s1] sm:$0x1]
    %v38 = vld [vmem:[%s2] sm:$0x1]
    %v40 = vlaneseq
    %v41 = vshrl.u32 %v40, 7
    %v42 = vsub.s32 0, %v41
    %v43 = vrot.slane %v37, %v42
    %v45 = vmul.f32 %v29, %v43
    %v46 = vmul.f32 %v30, %v43
    %v47 = vmul.f32 %v31, %v43
    %v48 = vmul.f32 %v32, %v43
    %v49 = vmul.f32 %v33, %v43
    %v50 = vmul.f32 %v34, %v43
    %v51 = vmul.f32 %v35, %v43
    %v52 = vmul.f32 %v36, %v43
    %53 = vadd.xlane.f32.xlu0 %v45
    %v54 = vpop.xlane.xlu0 %53
    %55 = vadd.xlane.f32.xlu0 %v46
    %v56 = vpop.xlane.xlu0 %55
    %57 = vadd.xlane.f32.xlu0 %v47
    %v58 = vpop.xlane.xlu0 %57
    %59 = vadd.xlane.f32.xlu0 %v48
    %v60 = vpop.xlane.xlu0 %59
    %61 = vadd.xlane.f32.xlu0 %v49
    %v62 = vpop.xlane.xlu0 %61
    %63 = vadd.xlane.f32.xlu0 %v50
    %v64 = vpop.xlane.xlu0 %63
    %65 = vadd.xlane.f32.xlu0 %v51
    %v66 = vpop.xlane.xlu0 %65
    %67 = vadd.xlane.f32.xlu0 %v52
    %v68 = vpop.xlane.xlu0 %67
    %v70 = vlaneseq
    %v71 = vshrl.u32 %v70, 7
    %v72 = vsub.s32 0, %v71
    %v73 = vrot.slane %v38, %v72
    %75 = vbcast.lane.b32.xlu0 %v73, 256
    %v76 = vpop.permute.xlu0 %75
    %v78 = vadd.f32 %v54, %v76
    %v79 = vadd.f32 %v56, %v76
    %v80 = vadd.f32 %v58, %v76
    %v81 = vadd.f32 %v60, %v76
    %v82 = vadd.f32 %v62, %v76
    %v83 = vadd.f32 %v64, %v76
    %v84 = vadd.f32 %v66, %v76
    %v85 = vadd.f32 %v68, %v76
    %v86 = vtanh.pop %v78
    %v87 = vtanh.pop %v79
    %v88 = vtanh.pop %v80
    %v89 = vtanh.pop %v81
    %v90 = vtanh.pop %v82
    %v91 = vtanh.pop %v83
    %v92 = vtanh.pop %v84
    %v93 = vtanh.pop %v85
    %v94 = vmul.f32 %v86, 1.442695
    %v95 = vpow.pop %v94
    %v96 = vmul.f32 %v87, 1.442695
    %v97 = vpow.pop %v96
    %v98 = vmul.f32 %v88, 1.442695
    %v99 = vpow.pop %v98
    %v100 = vmul.f32 %v89, 1.442695
    %v101 = vpow.pop %v100
    %v102 = vmul.f32 %v90, 1.442695
    %v103 = vpow.pop %v102
    %v104 = vmul.f32 %v91, 1.442695
    %v105 = vpow.pop %v104
    %v106 = vmul.f32 %v92, 1.442695
    %v107 = vpow.pop %v106
    %v108 = vmul.f32 %v93, 1.442695
    %v109 = vpow.pop %v108
    %118 = vset.pattern.permute.xlu0 0
    %119 = vperm.xlu0 %118, %v95
    %v120 = vpop.permute.xlu0 %119
    %121 = vset.pattern.permute.xlu0 0
    %122 = vperm.xlu0 %121, %v97
    %v123 = vpop.permute.xlu0 %122
    %124 = vset.pattern.permute.xlu0 0
    %125 = vperm.xlu0 %124, %v99
    %v126 = vpop.permute.xlu0 %125
    %127 = vset.pattern.permute.xlu0 0
    %128 = vperm.xlu0 %127, %v101
    %v129 = vpop.permute.xlu0 %128
    %130 = vset.pattern.permute.xlu0 0
    %131 = vperm.xlu0 %130, %v103
    %v132 = vpop.permute.xlu0 %131
    %133 = vset.pattern.permute.xlu0 0
    %134 = vperm.xlu0 %133, %v105
    %v135 = vpop.permute.xlu0 %134
    %136 = vset.pattern.permute.xlu0 0
    %137 = vperm.xlu0 %136, %v107
    %v138 = vpop.permute.xlu0 %137
    %139 = vset.pattern.permute.xlu0 0
    %140 = vperm.xlu0 %139, %v109
    %v141 = vpop.permute.xlu0 %140
    %v142 = vlaneseq
    %v143 = vand.u32 %v142, 127
    %v144 = vlaneseq
    %v145 = vshrl.u32 %v144, 7
    %v146 = vsub.s32 %v143, %v145
    %v147 = vrot.slane %v120, %v146
    %v148 = vlaneseq
    %v149 = vshrl.u32 %v148, 7
    %v150 = vsub.s32 %v143, %v149
    %v151 = vrot.slane %v123, %v150
    %v152 = vlaneseq
    %v153 = vshrl.u32 %v152, 7
    %v154 = vsub.s32 %v143, %v153
    %v155 = vrot.slane %v126, %v154
    %v156 = vlaneseq
    %v157 = vshrl.u32 %v156, 7
    %v158 = vsub.s32 %v143, %v157
    %v159 = vrot.slane %v129, %v158
    %v160 = vlaneseq
    %v161 = vshrl.u32 %v160, 7
    %v162 = vsub.s32 %v143, %v161
    %v163 = vrot.slane %v132, %v162
    %v164 = vlaneseq
    %v165 = vshrl.u32 %v164, 7
    %v166 = vsub.s32 %v143, %v165
    %v167 = vrot.slane %v135, %v166
    %v168 = vlaneseq
    %v169 = vshrl.u32 %v168, 7
    %v170 = vsub.s32 %v143, %v169
    %v171 = vrot.slane %v138, %v170
    %v172 = vlaneseq
    %v173 = vshrl.u32 %v172, 7
    %v174 = vsub.s32 %v143, %v173
    %v175 = vrot.slane %v141, %v174
    %vm176 = vcmask 1041409
    %v177 = vsel %vm176, %v151, %v147
    %vm178 = vcmask 1042434
    %v179 = vsel %vm178, %v155, %v177
    %vm180 = vcmask 1043459
    %v181 = vsel %vm180, %v159, %v179
    %vm182 = vcmask 1044484
    %v183 = vsel %vm182, %v163, %v181
    %vm184 = vcmask 1045509
    %v185 = vsel %vm184, %v167, %v183
    %vm186 = vcmask 1046534
    %v187 = vsel %vm186, %v171, %v185
    %vm188 = vcmask 1047559
    %v189 = vsel %vm188, %v175, %v187
    %vm191 = vcmask 64512
    %v192 = vsel %vm191, %v189, 0.0
    %193 = vadd.xlane.f32.xlu0 %v192
    %v194 = vpop.xlane.xlu0 %193
    %v196 = vlaneseq
    %v197 = vshrl.u32 %v196, 7
    %v198 = vsub.s32 0, %v197
    %v199 = vrot.slane %v194, %v198
    %v200 = vlaneseq
    %v201 = vshrl.u32 %v200, 7
    %v202 = vsub.s32 1, %v201
    %v203 = vrot.slane %v194, %v202
    %v204 = vlaneseq
    %v205 = vshrl.u32 %v204, 7
    %v206 = vsub.s32 2, %v205
    %v207 = vrot.slane %v194, %v206
    %v208 = vlaneseq
    %v209 = vshrl.u32 %v208, 7
    %v210 = vsub.s32 3, %v209
    %v211 = vrot.slane %v194, %v210
    %v212 = vlaneseq
    %v213 = vshrl.u32 %v212, 7
    %v214 = vsub.s32 4, %v213
    %v215 = vrot.slane %v194, %v214
    %v216 = vlaneseq
    %v217 = vshrl.u32 %v216, 7
    %v218 = vsub.s32 5, %v217
    %v219 = vrot.slane %v194, %v218
    %v220 = vlaneseq
    %v221 = vshrl.u32 %v220, 7
    %v222 = vsub.s32 6, %v221
    %v223 = vrot.slane %v194, %v222
    %v224 = vlaneseq
    %v225 = vshrl.u32 %v224, 7
    %v226 = vsub.s32 7, %v225
    %v227 = vrot.slane %v194, %v226
    %v236 = vrcp.pop %v199
    %v237 = vmul.f32 %v95, %v236
    %v238 = vrcp.pop %v203
    %v239 = vmul.f32 %v97, %v238
    %v240 = vrcp.pop %v207
    %v241 = vmul.f32 %v99, %v240
    %v242 = vrcp.pop %v211
    %v243 = vmul.f32 %v101, %v242
    %v244 = vrcp.pop %v215
    %v245 = vmul.f32 %v103, %v244
    %v246 = vrcp.pop %v219
    %v247 = vmul.f32 %v105, %v246
    %v248 = vrcp.pop %v223
    %v249 = vmul.f32 %v107, %v248
    %v250 = vrcp.pop %v227
    %v251 = vmul.f32 %v109, %v250
    %v252 = vadd.f32 %v237, 1e-10
    %v253 = vadd.f32 %v239, 1e-10
    %v254 = vadd.f32 %v241, 1e-10
    %v255 = vadd.f32 %v243, 1e-10
    %v256 = vadd.f32 %v245, 1e-10
    %v257 = vadd.f32 %v247, 1e-10
    %v258 = vadd.f32 %v249, 1e-10
    %v259 = vadd.f32 %v251, 1e-10
    %261 = vset.pattern.permute.xlu0 0
    %262 = vperm.xlu0 %261, %v252
    %v263 = vpop.permute.xlu0 %262
    %266 = vset.pattern.permute.xlu0 0
    %267 = vperm.xlu0 %266, %v253
    %v268 = vpop.permute.xlu0 %267
    %271 = vset.pattern.permute.xlu0 0
    %272 = vperm.xlu0 %271, %v254
    %v273 = vpop.permute.xlu0 %272
    %276 = vset.pattern.permute.xlu0 0
    %277 = vperm.xlu0 %276, %v255
    %v278 = vpop.permute.xlu0 %277
    %281 = vset.pattern.permute.xlu0 0
    %282 = vperm.xlu0 %281, %v256
    %v283 = vpop.permute.xlu0 %282
    %286 = vset.pattern.permute.xlu0 0
    %287 = vperm.xlu0 %286, %v257
    %v288 = vpop.permute.xlu0 %287
    %291 = vset.pattern.permute.xlu0 0
    %292 = vperm.xlu0 %291, %v258
    %v293 = vpop.permute.xlu0 %292
    %296 = vset.pattern.permute.xlu0 0
    %297 = vperm.xlu0 %296, %v259
    %v298 = vpop.permute.xlu0 %297
    %v300 = vmul.f32 %v29, %v263
    %v301 = vmul.f32 %v30, %v268
    %v302 = vmul.f32 %v31, %v273
    %v303 = vmul.f32 %v32, %v278
    %v304 = vmul.f32 %v33, %v283
    %v305 = vmul.f32 %v34, %v288
    %v306 = vmul.f32 %v35, %v293
    %v307 = vmul.f32 %v36, %v298
    %v308 = vrot.slane %v300, 4
    %v309 = vadd.f32 %v300, %v308
    %v310 = vrot.slane %v309, 2
    %v311 = vadd.f32 %v309, %v310
    %v312 = vrot.slane %v311, 1
    %v313 = vadd.f32 %v311, %v312
    %v314 = vrot.slane %v301, 4
    %v315 = vadd.f32 %v301, %v314
    %v316 = vrot.slane %v315, 2
    %v317 = vadd.f32 %v315, %v316
    %v318 = vrot.slane %v317, 1
    %v319 = vadd.f32 %v317, %v318
    %v320 = vrot.slane %v302, 4
    %v321 = vadd.f32 %v302, %v320
    %v322 = vrot.slane %v321, 2
    %v323 = vadd.f32 %v321, %v322
    %v324 = vrot.slane %v323, 1
    %v325 = vadd.f32 %v323, %v324
    %v326 = vrot.slane %v303, 4
    %v327 = vadd.f32 %v303, %v326
    %v328 = vrot.slane %v327, 2
    %v329 = vadd.f32 %v327, %v328
    %v330 = vrot.slane %v329, 1
    %v331 = vadd.f32 %v329, %v330
    %v332 = vrot.slane %v304, 4
    %v333 = vadd.f32 %v304, %v332
    %v334 = vrot.slane %v333, 2
    %v335 = vadd.f32 %v333, %v334
    %v336 = vrot.slane %v335, 1
    %v337 = vadd.f32 %v335, %v336
    %v338 = vrot.slane %v305, 4
    %v339 = vadd.f32 %v305, %v338
    %v340 = vrot.slane %v339, 2
    %v341 = vadd.f32 %v339, %v340
    %v342 = vrot.slane %v341, 1
    %v343 = vadd.f32 %v341, %v342
    %v344 = vrot.slane %v306, 4
    %v345 = vadd.f32 %v306, %v344
    %v346 = vrot.slane %v345, 2
    %v347 = vadd.f32 %v345, %v346
    %v348 = vrot.slane %v347, 1
    %v349 = vadd.f32 %v347, %v348
    %v350 = vrot.slane %v307, 4
    %v351 = vadd.f32 %v307, %v350
    %v352 = vrot.slane %v351, 2
    %v353 = vadd.f32 %v351, %v352
    %v354 = vrot.slane %v353, 1
    %v355 = vadd.f32 %v353, %v354
    %v364 = vsel %vm176, %v319, %v313
    %v365 = vsel %vm178, %v325, %v364
    %v366 = vsel %vm180, %v331, %v365
    %v367 = vsel %vm182, %v337, %v366
    %v368 = vsel %vm184, %v343, %v367
    %v369 = vsel %vm186, %v349, %v368
    %v370 = vsel %vm188, %v355, %v369
    %372 = vst [vmem:[#allocation5] sm:$0xff] %v370
    // Predicated region
    $region18: #{tpu_custom_call.1} parent=1 // pred_check
      _
    $region19: #{tpu_custom_call.1} parent=1 // pred_check_branch
      %374 = sbr.rel (0) target = $region21
    $region20: #{tpu_custom_call.1} parent=1 // pred_region
      %s376 = ssub.s32 128, 128
      %377 = vsyncadd [#allocation4], %s376
      %s379 = sshll.u32 [#allocation5], 4
      %s380 = int_to_ptr.vmem [resolvable:$true] %s379
      %382 = dma.vmem_to_hbm [thread:$0]  %s380, 128, %s3, [#allocation4]
    $region21: #{tpu_custom_call.1} parent=1 // pred_fallthru
      _
    // Predicated region
    $region22: #{tpu_custom_call.1} parent=1 // pred_check
      _
    $region23: #{tpu_custom_call.1} parent=1 // pred_check_branch
      %384 = sbr.rel (0) target = $region25
    $region24: #{tpu_custom_call.1} parent=1 // pred_region
      %385 = dma.done [#allocation4], 128
    $region25: #{tpu_custom_call.1} parent=1 // pred_fallthru
      _
    %386 = vsyncpa [#allocation3], 1
    %387 = vsyncpa [#allocation4], 1

</llo_original>
